<compile_context>
chip_gen: v7x
topology: tpu7x:2x2x1
jax: 0.10.0
libtpu: 0.0.40
codegen_flags: <defaults>
</compile_context>

<pallas_src>
import copy
import math

import jax
import jax.numpy as jnp
from jax.experimental import pallas as pl
from jax.experimental.pallas import tpu as pltpu

_LANES = 128                 # vreg lane width: last dim must be lane-dense
_SUBLANES = 32               # row granularity safe for f32 / bf16 / int8 packing
_MAX_BLOCK_BYTES = 2 << 20   # 2 MiB per block -> 4 buffers (2 in + 2 out) = 8 MiB


def _copy_kernel(x_ref, o_ref):
    # Identity: the base class defines no transformation of the point cloud.
    o_ref[...] = x_ref[...]


@jax.jit
def _pointcloud_identity_kernel(x):
    """Route the point cloud through a lane-dense Pallas TPU identity kernel."""
    orig_shape = x.shape
    total = math.prod(orig_shape)

    # Single pad: make the flat length a multiple of 128*32 so the 2-D slab is
    # lane-dense (last dim = 128, unmasked `vst`) with sublane-aligned rows.
    chunk = _LANES * _SUBLANES
    padded_total = pl.cdiv(total, chunk) * chunk      # static python int math
    flat = x.reshape(-1)
    if padded_total != total:
        flat = jnp.pad(flat, (0, padded_total - total))
    rows = padded_total // _LANES
    x2d = flat.reshape(rows, _LANES)

    itemsize = jnp.dtype(x2d.dtype).itemsize
    bytes_per_row = _LANES * itemsize
    max_rows = max(_SUBLANES,
                   (_MAX_BLOCK_BYTES // bytes_per_row) // _SUBLANES * _SUBLANES)
    block_rows = min(rows, max_rows)
    # No block-multiple padding: cdiv grid, Pallas masks the partial edge block.
    grid = (pl.cdiv(rows, block_rows),)

    out2d = pl.pallas_call(
        _copy_kernel,
        out_shape=jax.ShapeDtypeStruct((rows, _LANES), x2d.dtype),
        grid=grid,
        in_specs=[pl.BlockSpec((block_rows, _LANES), lambda i: (i, 0))],
        out_specs=pl.BlockSpec((block_rows, _LANES), lambda i: (i, 0)),
        compiler_params=pltpu.CompilerParams(
            dimension_semantics=("parallel",),  # engages v7x's 2nd TensorCore
            vmem_limit_bytes=32 << 20,
        ),
        cost_estimate=pl.CostEstimate(
            flops=0,
            transcendentals=0,
            bytes_accessed=2 * rows * _LANES * itemsize,
        ),
    )(x2d)

    # Strip padding and restore the original (B, N, C) layout.
    return out2d.reshape(-1)[:total].reshape(orig_shape)


class PointBackbone:
    """JAX/Pallas port of mani_skill_learn PointBackbone (abstract base).

    The reference `forward_raw` raises NotImplementedError (no compute), so
    the only semantically safe behavior is identity.  By default the identity
    is short-circuited (no HBM traffic at all).  Pass
    `identity_via_pallas=True` to route the cloud through the lane-dense
    Pallas copy kernel (e.g. to exercise the TPU path).
    """

    def __init__(self, identity_via_pallas: bool = False):
        self.identity_via_pallas = identity_via_pallas

    def __call__(self, pcd):
        return self.forward(pcd)

    def forward(self, pcd):
        # Mirror `pcd = pcd.copy()` (dict shallow copy / tensor copy).
        pcd = copy.copy(pcd) if isinstance(pcd, dict) else pcd
        if isinstance(pcd, dict):
            if 'pointcloud' in pcd:
                pcd['pcd'] = pcd['pointcloud']
                del pcd['pointcloud']
            assert 'pcd' in pcd
            return self.forward_raw(**pcd)
        else:
            return self.forward_raw(pcd)

    def forward_raw(self, pcd, state=None):
        # TODO(synk): the PyTorch base class raises NotImplementedError here
        # (no compute is defined); identity is the only safe implementation.
        # 'state' is accepted but unused, matching the base class signature.
        if self.identity_via_pallas:
            return _pointcloud_identity_kernel(pcd)
        return pcd  # short-circuit: a semantic no-op needs no HBM traffic


if __name__ == "__main__":
    key = jax.random.PRNGKey(0)
    k_pcd, k_state = jax.random.split(key)

    B, N, C = 2, 64, 3          # small point cloud: batch=2, 64 points, xyz
    pcd = jax.random.normal(k_pcd, (B, N, C), dtype=jnp.float32)
    state = jax.random.normal(k_state, (B, 8), dtype=jnp.float32)

    # Model that exercises the Pallas identity kernel.
    model_kernel = PointBackbone(identity_via_pallas=True)

    # Path 1: raw tensor input through the Pallas kernel.
    out_tensor = model_kernel(pcd)
    out_tensor = jax.block_until_ready(out_tensor)
    assert out_tensor.shape == (B, N, C)
    assert jnp.allclose(out_tensor, pcd)

    # Path 2: dict input with the legacy 'pointcloud' key (renamed to 'pcd'),
    # still through the Pallas kernel.
    out_dict = model_kernel({'pointcloud': pcd, 'state': state})
    out_dict = jax.block_until_ready(out_dict)
    assert out_dict.shape == (B, N, C)
    assert jnp.allclose(out_dict, pcd)

    # Path 3: default model short-circuits the identity (perf-review default).
    model_fast = PointBackbone()
    out_fast = jax.block_until_ready(model_fast(pcd))
    assert out_fast.shape == (B, N, C)
    assert jnp.allclose(out_fast, pcd)

    print("KERNEL_OK")
</pallas_src>

<mosaic_0001>
module attributes {stable_mosaic.version = 11 : i64} {
  func.func @_copy_kernel(%arg0: i32, %arg1: memref<32x128xf32, #tpu.memory_space<vmem>>, %arg2: memref<32x128xf32, #tpu.memory_space<vmem>>) attributes {dimension_semantics = [#tpu.dimension_semantics<parallel>], iteration_bounds = array<i64: 1>, scalar_prefetch = 0 : i64, scratch_operands = 0 : i64, tpu.core_type = #tpu.core_type<tc>, window_params = [{transform_indices = @transform_0, window_bounds = array<i64: 32, 128>}, {transform_indices = @transform_1, window_bounds = array<i64: 32, 128>}]} {
    %c0 = arith.constant 0 : index
    %c0_0 = arith.constant 0 : index
    %0 = vector.load %arg1[%c0, %c0_0] : memref<32x128xf32, #tpu.memory_space<vmem>>, vector<32x128xf32>
    %c0_1 = arith.constant 0 : index
    %c0_2 = arith.constant 0 : index
    %1 = vector.load %arg2[%c0_1, %c0_2] : memref<32x128xf32, #tpu.memory_space<vmem>>, vector<32x128xf32>
    tpu.vector_store %arg2[%c0_1, %c0_2], %0 {strides = array<i32>} : memref<32x128xf32, #tpu.memory_space<vmem>>, vector<32x128xf32>,
    return
  }
  func.func @transform_0(%arg0: i32) -> (i32, i32) {
    %c0_i32 = arith.constant 0 : i32
    %c0_i32_0 = arith.constant 0 : i32
    return %arg0, %c0_i32 : i32, i32
  }
  func.func @transform_1(%arg0: i32) -> (i32, i32) {
    %c0_i32 = arith.constant 0 : i32
    %c0_i32_0 = arith.constant 0 : i32
    return %arg0, %c0_i32 : i32, i32
  }
}

</mosaic_0001>

<llo_original>
// kernel: _pointcloud_identity_kernel.1
$region0: #{_pointcloud_identity_kernel.1}
  #allocation0 [shape = 'u32[]', space=smem, size = 0x4, offset = 0x4, fixed_abs, tag = 'smem constant byte address 0x4 - core index']
  #allocation1 [shape = 'u32[144,128]{1,0:T(1,128)}', space=vmem, size = 0x12000, scoped, tag = 'internal scratch']
  %s0 = inlined_call_operand.vmem [shape: f32[32,128], index: 0, kind: input, shape index: {}]
  %s1 = inlined_call_operand.vmem [shape: f32[32,128], index: 1, kind: output, shape index: {}]
  %s2 = sld [smem:[#allocation0]]
  $region14: #{_pointcloud_identity_kernel.1} parent=0
    _
  %s4 = ssub.s32 1, %s2
  %s5 = scalar_select 0, %s4, %s2
  // Predicated region
  $region2: #{_pointcloud_identity_kernel.1} parent=0 // pred_check
    _
  $region3: #{_pointcloud_identity_kernel.1} parent=0 // pred_check_branch
    %7 = sbr.rel (0) target = $region5
  $region4: #{_pointcloud_identity_kernel.1} parent=0 // pred_region
    _
  $region5: #{_pointcloud_identity_kernel.1} parent=0 // pred_fallthru
    _
  %v8 = vld [vmem:[%s0] sm:$0xff]
  %v9 = vld [vmem:[%s0 + $0x8] sm:$0xff]
  %v10 = vld [vmem:[%s0 + $0x10] sm:$0xff]
  %v11 = vld [vmem:[%s0 + $0x18] sm:$0xff]
  %12 = vst [vmem:[%s1] sm:$0xff] %v8
  %13 = vst [vmem:[%s1 + $0x8] sm:$0xff] %v9
  %14 = vst [vmem:[%s1 + $0x10] sm:$0xff] %v10
  %15 = vst [vmem:[%s1 + $0x18] sm:$0xff] %v11
  // Predicated region
  $region6: #{_pointcloud_identity_kernel.1} parent=0 // pred_check
    _
  $region7: #{_pointcloud_identity_kernel.1} parent=0 // pred_check_branch
    %17 = sbr.rel (0) target = $region9
  $region8: #{_pointcloud_identity_kernel.1} parent=0 // pred_region
    _
  $region9: #{_pointcloud_identity_kernel.1} parent=0 // pred_fallthru
    _
  // Predicated region
  $region10: #{_pointcloud_identity_kernel.1} parent=0 // pred_check
    _
  $region11: #{_pointcloud_identity_kernel.1} parent=0 // pred_check_branch
    %19 = sbr.rel (0) target = $region13
  $region12: #{_pointcloud_identity_kernel.1} parent=0 // pred_region
    _
  $region13: #{_pointcloud_identity_kernel.1} parent=0 // pred_fallthru
    _

</llo_original>
